<compile_context>
chip_gen: v7x
topology: tpu7x:2x2x1
jax: 0.10.0
libtpu: 0.0.40
codegen_flags: <defaults>
</compile_context>

<pallas_src>
import functools

import jax
import jax.numpy as jnp
from jax.experimental import pallas as pl
from jax.experimental.pallas import tpu as pltpu


def _round_up(x, m):
    return ((x + m - 1) // m) * m


def _num_tensorcores_per_chip():
    """2 on v7x (dual TensorCore), 1 otherwise.  Best-effort; safe default is 1."""
    try:
        kind = jax.devices()[0].device_kind.lower()
    except Exception:
        return 1
    return 2 if ("v7" in kind or "tpu7" in kind or "7x" in kind) else 1


def _choose_block_b(B, S_pad, H_pad, itemsize, num_tc):
    """Batch rows folded into one grid step (the MXU M dim is block_b * S_pad)."""
    # Single-TC chips: one big block amortizes per-step overhead; ~8 MiB of the memory
    # stream per block.  Dual-TC v7x: smaller budget and keep >= 2 grid steps when possible
    # so dimension_semantics=("parallel",) can feed both TensorCores.
    budget = (4 << 20) if num_tc >= 2 else (8 << 20)
    per_row = max(1, S_pad * H_pad * itemsize)
    bb = max(1, budget // per_row)
    if num_tc >= 2:
        bb = min(bb, max(1, pl.cdiv(B, 2)))
    if bb >= B:
        return B                       # single grid step; block == full (padded) batch
    bb = max(8, (bb // 8) * 8)         # keep out/length blocks sublane-aligned
    return B if bb >= B else bb


def _attentive_pooling_kernel(mem_ref, wt_ref, b_ref, u_ref, len_ref, out_ref,
                              *, approx_recip: bool):
    Bt, S, H = mem_ref.shape
    mem3 = mem_ref[...]                                  # (Bt, S, H) compute dtype
    mem2 = mem3.reshape(Bt * S, H)                       # layout no-op (S % sublane pack == 0)

    # h = tanh(mem @ W^T + b): one large MXU matmul (M = Bt*S), f32 accumulate, f32 tanh.
    h2 = jnp.tanh(
        jnp.dot(mem2, wt_ref[...], preferred_element_type=jnp.float32)
        + b_ref[...])                                    # (Bt*S, H) f32

    # score[b, s] = u . h[b, s, :] computed from f32 h: VPU multiply + lane reduce.
    # (No M=1 matmuls, no transpose of the (Bt, S, H) activations.)
    h3 = h2.reshape(Bt, S, H)                            # leading-dim split, layout no-op
    score = jnp.sum(h3 * u_ref[...], axis=-1)            # (Bt, S) f32, lane-dense on S

    # Mask from per-row lengths: a single broadcasted compare.
    lens = len_ref[...]                                  # (Bt, 1) int32
    col = jax.lax.broadcasted_iota(jnp.int32, (Bt, S), 1)
    score = jnp.where(col < lens, score, jnp.float32(-1.0e9))

    # Softmax over the (lane-dense) sequence axis, in f32.
    m = jnp.max(score, axis=-1, keepdims=True)
    e = jnp.exp(score - m)
    denom = jnp.sum(e, axis=-1, keepdims=True)
    alpha = e * pl.reciprocal(denom, approx=approx_recip)    # (Bt, S) f32

    # Weighted sum over S on the MXU: (Bt,1,S) x (Bt,S,H) -> (Bt,1,H).  This MXU work is
    # negligible next to the main matmul and the rhs orientation needs no transpose.
    pooled = jnp.einsum("bqs,bsh->bqh",
                        alpha.reshape(Bt, 1, S).astype(mem3.dtype), mem3,
                        preferred_element_type=jnp.float32)
    out_ref[...] = pooled.reshape(Bt, H).astype(out_ref.dtype)   # lane-dense (Bt, H) store


def attentive_pooling(memory, w, b, u, lengths=None, *,
                      compute_dtype=jnp.bfloat16, block_b=None):
    """memory: (B, S, H); w: (H, H) = nn.Linear(H, H).weight (out, in); b: (H,);
    u: (H,) = nn.Linear(H, 1).weight squeezed; lengths: (B,) int valid lengths."""
    B, S, H = memory.shape
    if lengths is None:
        lengths = jnp.full((B,), S, dtype=jnp.int32)
    lengths = lengths.astype(jnp.int32)

    cdt = jnp.dtype(compute_dtype)
    itemsize = cdt.itemsize

    # --- padding so every in-kernel reshape is a layout no-op and stores stay dense ---
    pack = 16 if itemsize < 4 else 8                     # sublane pack of the compute dtype
    S_pad = _round_up(S, pack)
    H_pad = H if (H % 128 == 0 or H < 256) else _round_up(H, 128)

    num_tc = _num_tensorcores_per_chip()
    if block_b is None:
        bb = _choose_block_b(B, S_pad, H_pad, itemsize, num_tc)
    else:
        bb = block_b if (block_b >= B or block_b % 8 == 0) else _round_up(block_b, 8)
        bb = min(bb, max(B, bb))
    B_pad = pl.cdiv(B, bb) * bb
    grid = (B_pad // bb,)

    # --- operand preparation (zero padding contributes nothing: padded positions are
    #     masked by the length mask and padded H columns carry zero weights) ---
    mem_c = memory.astype(cdt)
    if (B_pad, S_pad, H_pad) != (B, S, H):
        mem_c = jnp.pad(mem_c, ((0, B_pad - B), (0, S_pad - S), (0, H_pad - H)))
    len2 = jnp.pad(lengths, (0, B_pad - B)).reshape(B_pad, 1)

    w_t = w.T.astype(cdt)                                # (H_in, H_out): y = x @ W^T
    if H_pad != H:
        w_t = jnp.pad(w_t, ((0, H_pad - H), (0, H_pad - H)))
    b2 = jnp.pad(b, (0, H_pad - H)).reshape(1, H_pad).astype(jnp.float32)
    u2 = jnp.pad(u, (0, H_pad - H)).reshape(1, H_pad).astype(jnp.float32)

    # --- VMEM budget: double-buffered memory / weights / output + f32 temporaries ---
    out_item = jnp.dtype(memory.dtype).itemsize
    block_elems = bb * S_pad * H_pad
    est = (2 * block_elems * itemsize                    # memory block, double-buffered
           + 2 * H_pad * H_pad * itemsize                # W^T, double-buffered
           + 4 * H_pad * 4 + 2 * bb * 1024               # bias / u / lengths blocks
           + 3 * block_elems * 4                         # f32 h + temporaries
           + 2 * bb * H_pad * out_item                   # output block, double-buffered
           + (2 << 20))
    cap = (56 << 20) if num_tc >= 2 else (110 << 20)     # v7x VMEM is 64 MiB physical
    vmem_limit = int(min(max(est, 32 << 20), cap))

    kernel = functools.partial(_attentive_pooling_kernel,
                               approx_recip=(cdt != jnp.dtype(jnp.float32)))

    out_p = pl.pallas_call(
        kernel,
        out_shape=jax.ShapeDtypeStruct((B_pad, H_pad), memory.dtype),
        grid=grid,
        in_specs=[
            pl.BlockSpec((bb, S_pad, H_pad), lambda i: (i, 0, 0)),   # memory
            pl.BlockSpec((H_pad, H_pad), lambda i: (0, 0)),          # W^T (shared)
            pl.BlockSpec((1, H_pad), lambda i: (0, 0)),              # bias (f32)
            pl.BlockSpec((1, H_pad), lambda i: (0, 0)),              # u (f32 row)
            pl.BlockSpec((bb, 1), lambda i: (i, 0)),                 # lengths (int32)
        ],
        out_specs=pl.BlockSpec((bb, H_pad), lambda i: (i, 0)),       # lane-dense on H
        compiler_params=pltpu.CompilerParams(
            dimension_semantics=("parallel",),
            vmem_limit_bytes=vmem_limit),
    )(mem_c, w_t, b2, u2, len2)

    return out_p[:B, :H]


def attentive_pooling_ref(memory, w, b, u, lengths):
    h = jnp.tanh(jnp.einsum("bsh,oh->bso", memory, w) + b)
    score = jnp.einsum("bsh,h->bs", h, u)
    mask = jnp.arange(memory.shape[1])[None, :] < lengths[:, None]
    score = jnp.where(mask, score, -1.0e9)
    alpha = jax.nn.softmax(score, axis=-1)
    return jnp.sum(alpha[..., None] * memory, axis=1)


if __name__ == "__main__":
    B, S, H = 2, 8, 32
    key = jax.random.PRNGKey(0)
    k_mem, k_w, k_b, k_u = jax.random.split(key, 4)

    memory = jax.random.normal(k_mem, (B, S, H), dtype=jnp.float32)
    # Deterministic synthetic parameters (shapes from nn.Linear(H,H) / nn.Linear(H,1)).
    w = 0.1 * jax.random.normal(k_w, (H, H), dtype=jnp.float32)   # Linear(H,H).weight
    b = 0.1 * jax.random.normal(k_b, (H,), dtype=jnp.float32)     # Linear(H,H).bias
    u = 0.1 * jax.random.normal(k_u, (H,), dtype=jnp.float32)     # Linear(H,1).weight

    lengths = jnp.array([8, 5], dtype=jnp.int32)                  # variable seq lengths
    ref = attentive_pooling_ref(memory, w, b, u, lengths)

    # f32 compute path (exact reciprocal) — tight check.
    out_f32 = jax.block_until_ready(
        attentive_pooling(memory, w, b, u, lengths, compute_dtype=jnp.float32))
    assert out_f32.shape == (B, H)
    assert jnp.allclose(out_f32, ref, atol=1e-2, rtol=1e-2), (
        f"f32 mismatch, max err {jnp.max(jnp.abs(out_f32 - ref))}")

    # Default bf16 compute path (the performance configuration) — looser check.
    out_bf16 = jax.block_until_ready(attentive_pooling(memory, w, b, u, lengths))
    assert out_bf16.shape == (B, H)
    assert jnp.allclose(out_bf16, ref, atol=5e-2, rtol=5e-2), (
        f"bf16 mismatch, max err {jnp.max(jnp.abs(out_bf16 - ref))}")

    print("KERNEL_OK")
</pallas_src>

<mosaic_0001>
module attributes {stable_mosaic.version = 11 : i64} {
  func.func @_attentive_pooling_kernel(%arg0: i32, %arg1: memref<2x8x32xf32, #tpu.memory_space<vmem>>, %arg2: memref<32x32xf32, #tpu.memory_space<vmem>>, %arg3: memref<1x32xf32, #tpu.memory_space<vmem>>, %arg4: memref<1x32xf32, #tpu.memory_space<vmem>>, %arg5: memref<2x1xi32, #tpu.memory_space<vmem>>, %arg6: memref<2x32xf32, #tpu.memory_space<vmem>>) attributes {dimension_semantics = [#tpu.dimension_semantics<parallel>], iteration_bounds = array<i64: 1>, scalar_prefetch = 0 : i64, scratch_operands = 0 : i64, tpu.core_type = #tpu.core_type<tc>, window_params = [{transform_indices = @transform_0, window_bounds = array<i64: 2, 8, 32>}, {pipeline_mode = #tpu.pipeline_mode<synchronous>, transform_indices = @transform_1, window_bounds = array<i64: 32, 32>}, {pipeline_mode = #tpu.pipeline_mode<synchronous>, transform_indices = @transform_2, window_bounds = array<i64: 1, 32>}, {pipeline_mode = #tpu.pipeline_mode<synchronous>, transform_indices = @transform_3, window_bounds = array<i64: 1, 32>}, {transform_indices = @transform_4, window_bounds = array<i64: 2, 1>}, {transform_indices = @transform_5, window_bounds = array<i64: 2, 32>}]} {
    %c0 = arith.constant 0 : index
    %c0_0 = arith.constant 0 : index
    %c0_1 = arith.constant 0 : index
    %0 = vector.load %arg1[%c0, %c0_0, %c0_1] : memref<2x8x32xf32, #tpu.memory_space<vmem>>, vector<2x8x32xf32>
    %1 = vector.shape_cast %0 : vector<2x8x32xf32> to vector<16x32xf32>
    %c0_2 = arith.constant 0 : index
    %c0_3 = arith.constant 0 : index
    %2 = vector.load %arg2[%c0_2, %c0_3] : memref<32x32xf32, #tpu.memory_space<vmem>>, vector<32x32xf32>
    %cst = arith.constant dense<0.000000e+00> : vector<16x32xf32>
    %3 = tpu.matmul %1, %2, %cst {dimension_numbers = #tpu.dot_dimension_numbers<[1], [0], [0], [1], [0, 0, 1, 1], [], []>} : vector<16x32xf32>, vector<32x32xf32>, vector<16x32xf32> -> vector<16x32xf32>
    %c0_4 = arith.constant 0 : index
    %c0_5 = arith.constant 0 : index
    %4 = vector.load %arg3[%c0_4, %c0_5] : memref<1x32xf32, #tpu.memory_space<vmem>>, vector<1x32xf32>
    %5 = vector.broadcast %4 : vector<1x32xf32> to vector<16x32xf32>
    %6 = arith.addf %3, %5 : vector<16x32xf32>
    %7 = math.tanh %6 : vector<16x32xf32>
    %8 = vector.shape_cast %7 : vector<16x32xf32> to vector<2x8x32xf32>
    %c0_6 = arith.constant 0 : index
    %c0_7 = arith.constant 0 : index
    %9 = vector.load %arg4[%c0_6, %c0_7] : memref<1x32xf32, #tpu.memory_space<vmem>>, vector<1x32xf32>
    %10 = vector.shape_cast %9 : vector<1x32xf32> to vector<1x1x32xf32>
    %11 = vector.broadcast %10 : vector<1x1x32xf32> to vector<2x8x32xf32>
    %12 = arith.mulf %8, %11 : vector<2x8x32xf32>
    %cst_8 = arith.constant dense<0.000000e+00> : vector<2x8xf32>
    %13 = vector.multi_reduction <add>, %12, %cst_8 [2] : vector<2x8x32xf32> to vector<2x8xf32>
    %c0_9 = arith.constant 0 : index
    %c0_10 = arith.constant 0 : index
    %14 = vector.load %arg5[%c0_9, %c0_10] : memref<2x1xi32, #tpu.memory_space<vmem>>, vector<2x1xi32>
    %15 = tpu.iota {dimensions = array<i32: 1>} : vector<2x8xi32>
    %16 = vector.broadcast %14 : vector<2x1xi32> to vector<2x8xi32>
    %17 = arith.cmpi slt, %15, %16 : vector<2x8xi32>
    %cst_11 = arith.constant -1.000000e+09 : f32
    %18 = vector.broadcast %cst_11 : f32 to vector<2x8xf32>
    %19 = arith.select %17, %13, %18 : vector<2x8xi1>, vector<2x8xf32>
    %cst_12 = arith.constant dense<0xFF800000> : vector<2xf32>
    %20 = vector.multi_reduction <maximumf>, %19, %cst_12 [1] : vector<2x8xf32> to vector<2xf32>
    %21 = vector.shape_cast %20 : vector<2xf32> to vector<2x1xf32>
    %22 = vector.broadcast %21 : vector<2x1xf32> to vector<2x8xf32>
    %23 = arith.subf %19, %22 : vector<2x8xf32>
    %24 = math.exp %23 : vector<2x8xf32>
    %cst_13 = arith.constant dense<0.000000e+00> : vector<2xf32>
    %25 = vector.multi_reduction <add>, %24, %cst_13 [1] : vector<2x8xf32> to vector<2xf32>
    %26 = vector.shape_cast %25 : vector<2xf32> to vector<2x1xf32>
    %27 = tpu.reciprocal %26 : vector<2x1xf32> -> vector<2x1xf32>
    %28 = vector.broadcast %27 : vector<2x1xf32> to vector<2x8xf32>
    %29 = arith.mulf %24, %28 : vector<2x8xf32>
    %30 = vector.shape_cast %29 : vector<2x8xf32> to vector<2x1x8xf32>
    "tpu.trace_start"() <{level = 10 : i32, message = "bqs,bsh->bqh"}> : () -> ()
    %cst_14 = arith.constant dense<0.000000e+00> : vector<2x1x32xf32>
    %31 = tpu.matmul %30, %0, %cst_14 {dimension_numbers = #tpu.dot_dimension_numbers<[2], [1], [1], [2], [0, 0, 0, 1, 1, 2], [0], [0]>} : vector<2x1x8xf32>, vector<2x8x32xf32>, vector<2x1x32xf32> -> vector<2x1x32xf32>
    "tpu.trace_stop"() : () -> ()
    %32 = vector.shape_cast %31 : vector<2x1x32xf32> to vector<2x32xf32>
    %c0_15 = arith.constant 0 : index
    %c0_16 = arith.constant 0 : index
    %33 = vector.load %arg6[%c0_15, %c0_16] : memref<2x32xf32, #tpu.memory_space<vmem>>, vector<2x32xf32>
    tpu.vector_store %arg6[%c0_15, %c0_16], %32 {strides = array<i32>} : memref<2x32xf32, #tpu.memory_space<vmem>>, vector<2x32xf32>,
    return
  }
  func.func @transform_0(%arg0: i32) -> (i32, i32, i32) {
    %c0_i32 = arith.constant 0 : i32
    %c0_i32_0 = arith.constant 0 : i32
    %c0_i32_1 = arith.constant 0 : i32
    return %arg0, %c0_i32, %c0_i32_0 : i32, i32, i32
  }
  func.func @transform_1(%arg0: i32) -> (i32, i32) {
    %c0_i32 = arith.constant 0 : i32
    %c0_i32_0 = arith.constant 0 : i32
    %c0_i32_1 = arith.constant 0 : i32
    return %c0_i32, %c0_i32_0 : i32, i32
  }
  func.func @transform_2(%arg0: i32) -> (i32, i32) {
    %c0_i32 = arith.constant 0 : i32
    %c0_i32_0 = arith.constant 0 : i32
    %c0_i32_1 = arith.constant 0 : i32
    return %c0_i32, %c0_i32_0 : i32, i32
  }
  func.func @transform_3(%arg0: i32) -> (i32, i32) {
    %c0_i32 = arith.constant 0 : i32
    %c0_i32_0 = arith.constant 0 : i32
    %c0_i32_1 = arith.constant 0 : i32
    return %c0_i32, %c0_i32_0 : i32, i32
  }
  func.func @transform_4(%arg0: i32) -> (i32, i32) {
    %c0_i32 = arith.constant 0 : i32
    %c0_i32_0 = arith.constant 0 : i32
    return %arg0, %c0_i32 : i32, i32
  }
  func.func @transform_5(%arg0: i32) -> (i32, i32) {
    %c0_i32 = arith.constant 0 : i32
    %c0_i32_0 = arith.constant 0 : i32
    return %arg0, %c0_i32 : i32, i32
  }
}

</mosaic_0001>

<llo_original>
// kernel: tpu_custom_call.1
$region0: #{tpu_custom_call.1}
  #allocation0 [shape = 'u32[]', space=smem, size = 0x4, offset = 0x4, fixed_abs, tag = 'smem constant byte address 0x4 - core index']
  #allocation1 [shape = 'u32[144,128]{1,0:T(1,128)}', space=vmem, size = 0x12000, scoped, tag = 'internal scratch']
  %s0 = inlined_call_operand.hbm [shape: f32[2,8,32], index: 0, kind: input, shape index: {}]
  %s1 = inlined_call_operand.hbm [shape: f32[32,32], index: 1, kind: input, shape index: {}]
  %s2 = inlined_call_operand.vmem [shape: f32[1,32], index: 2, kind: input, shape index: {}]
  %s3 = inlined_call_operand.vmem [shape: f32[1,32], index: 3, kind: input, shape index: {}]
  %s4 = inlined_call_operand.vmem [shape: s32[2,1], index: 4, kind: input, shape index: {}]
  %s5 = inlined_call_operand.hbm [shape: f32[2,32], index: 5, kind: output, shape index: {}]
  %s6 = sld [smem:[#allocation0]]
  $region38: #{tpu_custom_call.1} parent=0
    _
  %s8 = ssub.s32 1, %s6
  %s9 = scalar_select 0, %s8, %s6
  $region1: #{tpu_custom_call.1} parent=0
    #allocation2 [shape = 'u8[8192]{0}', space=vmem, size = 0x2000, scoped, tag = 'input window, operand 0, single buffered']
    #allocation3 [shape = 's32[1]{0}', space=sflag, size = 0x4, scoped, tag = 'scoped memory for tpu_custom_call.1']
    #allocation4 [shape = 's32[1]{0}', space=sflag, size = 0x4, scoped, tag = 'scoped memory for tpu_custom_call.1']
    #allocation5 [shape = 'u8[16384]{0}', space=vmem, size = 0x4000, scoped, tag = 'input window, operand 1, single buffered']
    #allocation6 [shape = 's32[1]{0}', space=sflag, size = 0x4, scoped, tag = 'scoped memory for tpu_custom_call.1']
    #allocation7 [shape = 'u8[1024]{0}', space=vmem, size = 0x400, scoped, tag = 'output window, operand 0, single buffered']
    %10 = vsyncpa [#allocation3], 0
    %11 = vsyncpa [#allocation6], 0
    %12 = vsyncpa [#allocation4], 0
    // Predicated region
    $region2: #{tpu_custom_call.1} parent=1 // pred_check
      _
    $region3: #{tpu_custom_call.1} parent=1 // pred_check_branch
      %14 = sbr.rel (0) target = $region5
    $region4: #{tpu_custom_call.1} parent=1 // pred_region
      %s16 = ssub.s32 256, 256
      %17 = vsyncadd [#allocation3], %s16
      %s18 = sshll.u32 [#allocation2], 4
      %s19 = int_to_ptr.vmem [resolvable:$true] %s18
      %24 = dma.hbm_to_vmem [thread:$0]  %s0, 256, %s19, [#allocation3], 128, 128, 8
    $region5: #{tpu_custom_call.1} parent=1 // pred_fallthru
      _
    // Predicated region
    $region6: #{tpu_custom_call.1} parent=1 // pred_check
      _
    $region7: #{tpu_custom_call.1} parent=1 // pred_check_branch
      %26 = sbr.rel (0) target = $region9
    $region8: #{tpu_custom_call.1} parent=1 // pred_region
      %s28 = ssub.s32 512, 512
      %29 = vsyncadd [#allocation6], %s28
      %s30 = sshll.u32 [#allocation5], 4
      %s31 = int_to_ptr.vmem [resolvable:$true] %s30
      %36 = dma.hbm_to_vmem [thread:$0]  %s1, 512, %s31, [#allocation6], 128, 128, 8
    $region9: #{tpu_custom_call.1} parent=1 // pred_fallthru
      _
    // Predicated region
    $region10: #{tpu_custom_call.1} parent=1 // pred_check
      _
    $region11: #{tpu_custom_call.1} parent=1 // pred_check_branch
      %38 = sbr.rel (0) target = $region13
    $region12: #{tpu_custom_call.1} parent=1 // pred_region
      _
    $region13: #{tpu_custom_call.1} parent=1 // pred_fallthru
      _
    // Predicated region
    $region14: #{tpu_custom_call.1} parent=1 // pred_check
      _
    $region15: #{tpu_custom_call.1} parent=1 // pred_check_branch
      %40 = sbr.rel (0) target = $region17
    $region16: #{tpu_custom_call.1} parent=1 // pred_region
      _
    $region17: #{tpu_custom_call.1} parent=1 // pred_fallthru
      _
    // Predicated region
    $region18: #{tpu_custom_call.1} parent=1 // pred_check
      _
    $region19: #{tpu_custom_call.1} parent=1 // pred_check_branch
      %42 = sbr.rel (0) target = $region21
    $region20: #{tpu_custom_call.1} parent=1 // pred_region
      _
    $region21: #{tpu_custom_call.1} parent=1 // pred_fallthru
      _
    // Predicated region
    $region22: #{tpu_custom_call.1} parent=1 // pred_check
      _
    $region23: #{tpu_custom_call.1} parent=1 // pred_check_branch
      %44 = sbr.rel (0) target = $region25
    $region24: #{tpu_custom_call.1} parent=1 // pred_region
      %45 = dma.done [#allocation3], 256
    $region25: #{tpu_custom_call.1} parent=1 // pred_fallthru
      _
    // Predicated region
    $region26: #{tpu_custom_call.1} parent=1 // pred_check
      _
    $region27: #{tpu_custom_call.1} parent=1 // pred_check_branch
      %47 = sbr.rel (0) target = $region29
    $region28: #{tpu_custom_call.1} parent=1 // pred_region
      %48 = dma.done [#allocation6], 512
    $region29: #{tpu_custom_call.1} parent=1 // pred_fallthru
      _
    %v49 = vld [vmem:[#allocation2] sm:$0xff]
    %v50 = vld [vmem:[#allocation2 + $0x8] sm:$0xff]
    %v51 = vld [vmem:[#allocation5] sm:$0xff]
    %v52 = vld [vmem:[#allocation5 + $0x8] sm:$0xff]
    %v53 = vld [vmem:[#allocation5 + $0x10] sm:$0xff]
    %v54 = vld [vmem:[#allocation5 + $0x18] sm:$0xff]
    %v55 = vld [vmem:[%s2] sm:$0x1]
    %v57 = vlaneseq
    %v58 = vshrl.u32 %v57, 7
    %v59 = vsub.s32 0, %v58
    %v60 = vrot.slane %v55, %v59
    %vm62 = vcmask 261120
    %v64 = vsel %vm62, %v49, 0
    %v67 = vsel %vm62, %v50, 0
    %69 = vmatprep.subr.mxu0 0.0
    %70 = vmatpush1.msra.mxu0 %v51
    %71 = vmatprep.subr.mxu0 0.0
    %72 = vmatpush1.msra.mxu0 %v52
    %73 = vmatprep.subr.mxu0 0.0
    %74 = vmatpush1.msra.mxu0 %v53
    %75 = vmatprep.subr.mxu0 0.0
    %76 = vmatpush1.msra.mxu0 %v54
    %77 = vmatprep.subr.mxu0 0.0
    %78 = vmatpush1.msra.mxu0 0.0
    %79 = vmatprep.subr.mxu0 0.0
    %80 = vmatpush1.msra.mxu0 0.0
    %81 = vmatprep.subr.mxu0 0.0
    %82 = vmatpush1.msra.mxu0 0.0
    %83 = vmatprep.subr.mxu0 0.0
    %84 = vmatpush1.msra.mxu0 0.0
    %85 = vmatprep.subr.mxu0 0.0
    %86 = vmatpush1.msra.mxu0 0.0
    %87 = vmatprep.subr.mxu0 0.0
    %88 = vmatpush1.msra.mxu0 0.0
    %89 = vmatprep.subr.mxu0 0.0
    %90 = vmatpush1.msra.mxu0 0.0
    %91 = vmatprep.subr.mxu0 0.0
    %92 = vmatpush1.msra.mxu0 0.0
    %93 = vmatprep.subr.mxu0 0.0
    %94 = vmatpush1.msra.mxu0 0.0
    %95 = vmatprep.subr.mxu0 0.0
    %96 = vmatpush1.msra.mxu0 0.0
    %97 = vmatprep.subr.mxu0 0.0
    %98 = vmatpush1.msra.mxu0 0.0
    %99 = vmatprep.subr.mxu0 0.0
    %100 = vmatpush1.msra.mxu0 0.0
    %101 = vmatprep.subr.mxu0 0.0
    %102 = vmatpush1.msra.mxu0 0.0
    %103 = vmatprep.subr.mxu0 0.0
    %104 = vmatpush1.msra.mxu0 0.0
    %105 = vmatprep.subr.mxu0 0.0
    %106 = vmatpush1.msra.mxu0 0.0
    %107 = vmatprep.subr.mxu0 0.0
    %108 = vmatpush1.msra.mxu0 0.0
    %109 = vmatprep.subr.mxu0 0.0
    %110 = vmatpush1.msra.mxu0 0.0
    %111 = vmatprep.subr.mxu0 0.0
    %112 = vmatpush1.msra.mxu0 0.0
    %113 = vmatprep.subr.mxu0 0.0
    %114 = vmatpush1.msra.mxu0 0.0
    %115 = vmatprep.subr.mxu0 0.0
    %116 = vmatpush1.msra.mxu0 0.0
    %117 = vmatprep.subr.mxu0 0.0
    %118 = vmatpush1.msra.mxu0 0.0
    %119 = vmatprep.subr.mxu0 0.0
    %120 = vmatpush1.msra.mxu0 0.0
    %121 = vmatprep.subr.mxu0 0.0
    %122 = vmatpush1.msra.mxu0 0.0
    %123 = vmatprep.subr.mxu0 0.0
    %124 = vmatpush1.msra.mxu0 0.0
    %125 = vmatprep.subr.mxu0 0.0
    %126 = vmatpush1.msra.mxu0 0.0
    %127 = vmatprep.subr.mxu0 0.0
    %128 = vmatpush1.msra.mxu0 0.0
    %129 = vmatprep.subr.mxu0 0.0
    %130 = vmatpush1.msra.mxu0 0.0
    %131 = vmatprep.subr.mxu0 0.0
    %132 = vmatpush1.msra.mxu0 0.0
    %133 = vmatprep.mubr.f32.mxu0 0.0
    %134 = vmatmul.mubr.f32.gmra.mrb[0].mxu0 %v64
    %v135 = vpop.f32.mrb[0].mxu0
    %v136 = vadd.f32 %v60, %v135
    %v137 = vpop.f32.mrb[0].mxu0
    %138 = vmatprep.mubr.f32.mxu0 0.0
    %139 = vmatmul.mubr.f32.gmra.mrb[0].mxu0 %v67
    %v140 = vpop.f32.mrb[0].mxu0
    %v141 = vadd.f32 %v60, %v140
    %v142 = vpop.f32.mrb[0].mxu0
    %143 = vdwg.mxu0
    %v144 = vtanh.pop %v136
    %v145 = vtanh.pop %v141
    %v146 = vld [vmem:[%s3] sm:$0x1]
    %v148 = vlaneseq
    %v149 = vshrl.u32 %v148, 7
    %v150 = vsub.s32 0, %v149
    %v151 = vrot.slane %v146, %v150
    %v153 = vmul.f32 %v144, %v151
    %v154 = vmul.f32 %v145, %v151
    %v155 = vsel %vm62, %v153, 0.0
    %156 = vadd.xlane.f32.xlu0 %v155
    %v157 = vpop.xlane.xlu0 %156
    %v158 = vsel %vm62, %v154, 0.0
    %159 = vadd.xlane.f32.xlu0 %v158
    %v160 = vpop.xlane.xlu0 %159
    %v161 = vld [vmem:[%s4] sm:$0x3]
    %v162 = vlaneseq
    %v163 = vand.u32 %v162, 127
    %164 = vset.pattern.permute.xlu0 0
    %165 = vperm.xlu0 %164, %v161
    %v166 = vpop.permute.xlu0 %165
    %vm167 = vcmp.lt.s32.totalorder %v163, %v166
    %v170 = vlaneseq
    %v171 = vshrl.u32 %v170, 7
    %v172 = vsub.s32 %v163, %v171
    %v173 = vrot.slane %v157, %v172
    %v174 = vlaneseq
    %v175 = vshrl.u32 %v174, 7
    %v176 = vsub.s32 %v163, %v175
    %v177 = vrot.slane %v160, %v176
    %vm178 = vcmask 1041409
    %v179 = vsel %vm178, %v177, %v173
    %v181 = vsel %vm167, %v179, -1e+09
    %vm182 = vcmask 58368
    %v183 = vsel %vm182, %v181, -inf
    %184 = vmax.xlane.f32.xlu0 %v183
    %v185 = vpop.xlane.xlu0 %184
    %v186 = vsub.f32 %v181, %v185
    %v187 = vmul.f32 %v186, 1.442695
    %v188 = vpow.pop %v187
    %v189 = vsel %vm182, %v188, 0.0
    %190 = vadd.xlane.f32.xlu0 %v189
    %v191 = vpop.xlane.xlu0 %190
    %v192 = vrcp.pop %v191
    %v193 = vmul.f32 %v188, %v192
    %v196 = vunpack.c.l.s4 1966171168
    %v197 = vunpack.c.0.s8 %v196
    %v198 = vlaneseq
    %v199 = vshrl.u32 %v198, 7
    %v200 = vsub.s32 %v197, %v199
    %v201 = vrot.slane %v193, %v200
    %v202 = vcombine.high %v201, %v201
    %v204 = vunpack.c.l.s4 1966171168
    %v205 = vunpack.c.0.s8 %v204
    %v206 = vlaneseq
    %v207 = vshrl.u32 %v206, 7
    %v208 = vsub.s32 %v205, %v207
    %v209 = vrot.slane %v201, %v208
    %v211 = vunpack.c.l.s4 1966171168
    %v212 = vunpack.c.0.s8 %v211
    %v213 = vlaneseq
    %v214 = vshrl.u32 %v213, 7
    %v215 = vsub.s32 %v212, %v214
    %v216 = vrot.slane %v202, %v215
    %vm217 = vcmask 64512
    %v218 = vsel %vm217, %v209, 0
    %220 = vmatprep.subr.mxu0 0.0
    %221 = vmatpush1.msra.mxu0 %v49
    %222 = vmatprep.subr.mxu0 0.0
    %223 = vmatpush1.msra.mxu0 0.0
    %224 = vmatprep.subr.mxu0 0.0
    %225 = vmatpush1.msra.mxu0 0.0
    %226 = vmatprep.subr.mxu0 0.0
    %227 = vmatpush1.msra.mxu0 0.0
    %228 = vmatprep.subr.mxu0 0.0
    %229 = vmatpush1.msra.mxu0 0.0
    %230 = vmatprep.subr.mxu0 0.0
    %231 = vmatpush1.msra.mxu0 0.0
    %232 = vmatprep.subr.mxu0 0.0
    %233 = vmatpush1.msra.mxu0 0.0
    %234 = vmatprep.subr.mxu0 0.0
    %235 = vmatpush1.msra.mxu0 0.0
    %236 = vmatprep.subr.mxu0 0.0
    %237 = vmatpush1.msra.mxu0 0.0
    %238 = vmatprep.subr.mxu0 0.0
    %239 = vmatpush1.msra.mxu0 0.0
    %240 = vmatprep.subr.mxu0 0.0
    %241 = vmatpush1.msra.mxu0 0.0
    %242 = vmatprep.subr.mxu0 0.0
    %243 = vmatpush1.msra.mxu0 0.0
    %244 = vmatprep.subr.mxu0 0.0
    %245 = vmatpush1.msra.mxu0 0.0
    %246 = vmatprep.subr.mxu0 0.0
    %247 = vmatpush1.msra.mxu0 0.0
    %248 = vmatprep.subr.mxu0 0.0
    %249 = vmatpush1.msra.mxu0 0.0
    %250 = vmatprep.subr.mxu0 0.0
    %251 = vmatpush1.msra.mxu0 0.0
    %252 = vmatprep.subr.mxu0 0.0
    %253 = vmatpush1.msra.mxu0 0.0
    %254 = vmatprep.subr.mxu0 0.0
    %255 = vmatpush1.msra.mxu0 0.0
    %256 = vmatprep.subr.mxu0 0.0
    %257 = vmatpush1.msra.mxu0 0.0
    %258 = vmatprep.subr.mxu0 0.0
    %259 = vmatpush1.msra.mxu0 0.0
    %260 = vmatprep.subr.mxu0 0.0
    %261 = vmatpush1.msra.mxu0 0.0
    %262 = vmatprep.subr.mxu0 0.0
    %263 = vmatpush1.msra.mxu0 0.0
    %264 = vmatprep.subr.mxu0 0.0
    %265 = vmatpush1.msra.mxu0 0.0
    %266 = vmatprep.subr.mxu0 0.0
    %267 = vmatpush1.msra.mxu0 0.0
    %268 = vmatprep.subr.mxu0 0.0
    %269 = vmatpush1.msra.mxu0 0.0
    %270 = vmatprep.subr.mxu0 0.0
    %271 = vmatpush1.msra.mxu0 0.0
    %272 = vmatprep.subr.mxu0 0.0
    %273 = vmatpush1.msra.mxu0 0.0
    %274 = vmatprep.subr.mxu0 0.0
    %275 = vmatpush1.msra.mxu0 0.0
    %276 = vmatprep.subr.mxu0 0.0
    %277 = vmatpush1.msra.mxu0 0.0
    %278 = vmatprep.subr.mxu0 0.0
    %279 = vmatpush1.msra.mxu0 0.0
    %280 = vmatprep.subr.mxu0 0.0
    %281 = vmatpush1.msra.mxu0 0.0
    %282 = vmatprep.subr.mxu0 0.0
    %283 = vmatpush1.msra.mxu0 0.0
    %284 = vmatprep.mubr.f32.mxu0 0.0
    %285 = vmatmul.mubr.f32.gmra.mrb[0].mxu0 %v218
    %v286 = vpop.f32.mrb[0].mxu0
    %v287 = vadd.f32 0.0, %v286
    %v288 = vpop.f32.mrb[0].mxu0
    %289 = vdwg.mxu0
    %v290 = vsel %vm217, %v216, 0
    %292 = vmatprep.subr.mxu0 0.0
    %293 = vmatpush1.msra.mxu0 %v50
    %294 = vmatprep.subr.mxu0 0.0
    %295 = vmatpush1.msra.mxu0 0.0
    %296 = vmatprep.subr.mxu0 0.0
    %297 = vmatpush1.msra.mxu0 0.0
    %298 = vmatprep.subr.mxu0 0.0
    %299 = vmatpush1.msra.mxu0 0.0
    %300 = vmatprep.subr.mxu0 0.0
    %301 = vmatpush1.msra.mxu0 0.0
    %302 = vmatprep.subr.mxu0 0.0
    %303 = vmatpush1.msra.mxu0 0.0
    %304 = vmatprep.subr.mxu0 0.0
    %305 = vmatpush1.msra.mxu0 0.0
    %306 = vmatprep.subr.mxu0 0.0
    %307 = vmatpush1.msra.mxu0 0.0
    %308 = vmatprep.subr.mxu0 0.0
    %309 = vmatpush1.msra.mxu0 0.0
    %310 = vmatprep.subr.mxu0 0.0
    %311 = vmatpush1.msra.mxu0 0.0
    %312 = vmatprep.subr.mxu0 0.0
    %313 = vmatpush1.msra.mxu0 0.0
    %314 = vmatprep.subr.mxu0 0.0
    %315 = vmatpush1.msra.mxu0 0.0
    %316 = vmatprep.subr.mxu0 0.0
    %317 = vmatpush1.msra.mxu0 0.0
    %318 = vmatprep.subr.mxu0 0.0
    %319 = vmatpush1.msra.mxu0 0.0
    %320 = vmatprep.subr.mxu0 0.0
    %321 = vmatpush1.msra.mxu0 0.0
    %322 = vmatprep.subr.mxu0 0.0
    %323 = vmatpush1.msra.mxu0 0.0
    %324 = vmatprep.subr.mxu0 0.0
    %325 = vmatpush1.msra.mxu0 0.0
    %326 = vmatprep.subr.mxu0 0.0
    %327 = vmatpush1.msra.mxu0 0.0
    %328 = vmatprep.subr.mxu0 0.0
    %329 = vmatpush1.msra.mxu0 0.0
    %330 = vmatprep.subr.mxu0 0.0
    %331 = vmatpush1.msra.mxu0 0.0
    %332 = vmatprep.subr.mxu0 0.0
    %333 = vmatpush1.msra.mxu0 0.0
    %334 = vmatprep.subr.mxu0 0.0
    %335 = vmatpush1.msra.mxu0 0.0
    %336 = vmatprep.subr.mxu0 0.0
    %337 = vmatpush1.msra.mxu0 0.0
    %338 = vmatprep.subr.mxu0 0.0
    %339 = vmatpush1.msra.mxu0 0.0
    %340 = vmatprep.subr.mxu0 0.0
    %341 = vmatpush1.msra.mxu0 0.0
    %342 = vmatprep.subr.mxu0 0.0
    %343 = vmatpush1.msra.mxu0 0.0
    %344 = vmatprep.subr.mxu0 0.0
    %345 = vmatpush1.msra.mxu0 0.0
    %346 = vmatprep.subr.mxu0 0.0
    %347 = vmatpush1.msra.mxu0 0.0
    %348 = vmatprep.subr.mxu0 0.0
    %349 = vmatpush1.msra.mxu0 0.0
    %350 = vmatprep.subr.mxu0 0.0
    %351 = vmatpush1.msra.mxu0 0.0
    %352 = vmatprep.subr.mxu0 0.0
    %353 = vmatpush1.msra.mxu0 0.0
    %354 = vmatprep.subr.mxu0 0.0
    %355 = vmatpush1.msra.mxu0 0.0
    %356 = vmatprep.mubr.f32.mxu0 0.0
    %357 = vmatmul.mubr.f32.gmra.mrb[0].mxu0 %v290
    %v358 = vpop.f32.mrb[0].mxu0
    %v359 = vadd.f32 0.0, %v358
    %v360 = vpop.f32.mrb[0].mxu0
    %361 = vdwg.mxu0
    %v364 = vrot.slane %v359, 7
    %v365 = vsel %vm178, %v364, %v287
    %vm367 = vcmask 254976
    %368 = vst.msk [vmem:[#allocation7] sm:$0x3] %vm367, %v365
    // Predicated region
    $region30: #{tpu_custom_call.1} parent=1 // pred_check
      _
    $region31: #{tpu_custom_call.1} parent=1 // pred_check_branch
      %370 = sbr.rel (0) target = $region33
    $region32: #{tpu_custom_call.1} parent=1 // pred_region
      %s372 = ssub.s32 32, 32
      %373 = vsyncadd [#allocation4], %s372
      %s375 = sshll.u32 [#allocation7], 4
      %s376 = int_to_ptr.vmem [resolvable:$true] %s375
      %378 = dma.vmem_to_hbm [thread:$0]  %s376, 32, %s5, [#allocation4]
    $region33: #{tpu_custom_call.1} parent=1 // pred_fallthru
      _
    // Predicated region
    $region34: #{tpu_custom_call.1} parent=1 // pred_check
      _
    $region35: #{tpu_custom_call.1} parent=1 // pred_check_branch
      %380 = sbr.rel (0) target = $region37
    $region36: #{tpu_custom_call.1} parent=1 // pred_region
      %381 = dma.done [#allocation4], 32
    $region37: #{tpu_custom_call.1} parent=1 // pred_fallthru
      _
    %382 = vsyncpa [#allocation3], 1
    %383 = vsyncpa [#allocation6], 1
    %384 = vsyncpa [#allocation4], 1

</llo_original>
